<compile_context>
chip_gen: v6e
topology: v6e:2x2x1
jax: 0.10.0
libtpu: 0.0.40
codegen_flags: <defaults>
</compile_context>

<pallas_src>
import math

import jax
import jax.numpy as jnp
from jax.experimental import pallas as pl
from jax.experimental.pallas import tpu as pltpu


def _row_std_kernel(y_ref, o_ref):
    # y_ref: (D, TR) tile — original rows on the lane axis, reduction dim D on
    #        sublanes.  o_ref: (1, TR) per-row std for this tile.
    y = y_ref[...].astype(jnp.float32)
    d = y.shape[0]
    mean = jnp.mean(y, axis=0, keepdims=True)                  # (1, TR)
    c = y - mean
    # Two-pass unbiased variance (ddof=1), matching torch.std default.
    # d == 1 gives 0/0 -> NaN, same as PyTorch.
    var = jnp.sum(c * c, axis=0, keepdims=True) / jnp.float32(d - 1)
    o_ref[...] = jnp.sqrt(var)


def _round_up(x: int, m: int) -> int:
    return ((x + m - 1) // m) * m


def target_std_metric(y_pred, y_real, *, max_tile_bytes: int = 8 * 1024 * 1024):
    """Pallas equivalent of TargetStdMetric.forward (y_pred is unused)."""
    del y_pred  # not used by the metric

    d = y_real.shape[-1]
    r = math.prod(y_real.shape[:-1])      # host-side int, no device work

    # Lane-dense layout: rows -> lanes. (R, D) -> (D, R).
    y2d_t = y_real.reshape(r, d).T

    # Tile size along the row/lane axis: multiple of 128, capped so one input
    # tile is <= max_tile_bytes (double buffering fits the VMEM limit below).
    bytes_per_col = d * y2d_t.dtype.itemsize
    max_tr = max(128, (max_tile_bytes // bytes_per_col) // 128 * 128)
    tr = min(_round_up(r, 128), max_tr)
    r_pad = _round_up(r, tr)
    num_tiles = r_pad // tr

    if r_pad != r:
        # Zero-pad the ragged tail; padded columns are sliced off below.
        y2d_t = jnp.pad(y2d_t, ((0, 0), (0, r_pad - r)))

    stds = pl.pallas_call(
        _row_std_kernel,
        out_shape=jax.ShapeDtypeStruct((1, r_pad), jnp.float32),
        grid=(num_tiles,),
        in_specs=[pl.BlockSpec((d, tr), lambda i: (0, i))],
        out_specs=pl.BlockSpec((1, tr), lambda i: (0, i)),
        compiler_params=pltpu.CompilerParams(
            dimension_semantics=("parallel",),
            vmem_limit_bytes=32 * 1024 * 1024,
        ),
    )(y2d_t)

    # Final mean over the TRUE row count (not per-tile means); tiny XLA reduce.
    return jnp.mean(stds[0, :r]).astype(y_real.dtype)


def target_std_metric_ref(y_pred, y_real):
    # plain-JAX reference (ddof=1 std along last dim, then mean)
    return jnp.mean(jnp.std(y_real, axis=-1, ddof=1)).astype(y_real.dtype)


if __name__ == "__main__":
    key = jax.random.PRNGKey(0)
    k1, k2 = jax.random.split(key)
    # Small (B, C, H, W) target tensor; H=18 makes R=144 (not a multiple of
    # 128) so the zero-pad / ragged-tail path is exercised.
    y_pred = jax.random.normal(k1, (2, 4, 18, 16), dtype=jnp.float32)
    y_real = jax.random.normal(k2, (2, 4, 18, 16), dtype=jnp.float32)

    out = target_std_metric(y_pred, y_real)
    jax.block_until_ready(out)

    ref = target_std_metric_ref(y_pred, y_real)
    assert jnp.allclose(out, ref, rtol=1e-5, atol=1e-5), (out, ref)

    # Also exercise the multi-tile (grid > 1) path with a tiny tile cap.
    out_tiled = target_std_metric(y_pred, y_real, max_tile_bytes=128 * 16 * 4)
    jax.block_until_ready(out_tiled)
    assert jnp.allclose(out_tiled, ref, rtol=1e-5, atol=1e-5), (out_tiled, ref)

    print("KERNEL_OK")
</pallas_src>

<mosaic_0001>
module attributes {stable_mosaic.version = 11 : i64} {
  func.func @_row_std_kernel(%arg0: i32, %arg1: memref<16x256xf32, #tpu.memory_space<vmem>>, %arg2: memref<1x256xf32, #tpu.memory_space<vmem>>) attributes {dimension_semantics = [#tpu.dimension_semantics<parallel>], iteration_bounds = array<i64: 1>, scalar_prefetch = 0 : i64, scratch_operands = 0 : i64, tpu.core_type = #tpu.core_type<tc>, window_params = [{transform_indices = @transform_0, window_bounds = array<i64: 16, 256>}, {transform_indices = @transform_1, window_bounds = array<i64: 1, 256>}]} {
    %c0 = arith.constant 0 : index
    %c0_0 = arith.constant 0 : index
    %0 = vector.load %arg1[%c0, %c0_0] : memref<16x256xf32, #tpu.memory_space<vmem>>, vector<16x256xf32>
    %cst = arith.constant dense<0.000000e+00> : vector<256xf32>
    %1 = vector.multi_reduction <add>, %0, %cst [0] : vector<16x256xf32> to vector<256xf32>
    %2 = vector.shape_cast %1 : vector<256xf32> to vector<1x256xf32>
    %cst_1 = arith.constant 1.600000e+01 : f32
    %3 = vector.broadcast %cst_1 : f32 to vector<1x256xf32>
    %4 = arith.divf %2, %3 : vector<1x256xf32>
    %5 = vector.broadcast %4 : vector<1x256xf32> to vector<16x256xf32>
    %6 = arith.subf %0, %5 : vector<16x256xf32>
    %7 = arith.mulf %6, %6 : vector<16x256xf32>
    %cst_2 = arith.constant dense<0.000000e+00> : vector<256xf32>
    %8 = vector.multi_reduction <add>, %7, %cst_2 [0] : vector<16x256xf32> to vector<256xf32>
    %9 = vector.shape_cast %8 : vector<256xf32> to vector<1x256xf32>
    %cst_3 = arith.constant 1.500000e+01 : f32
    %10 = vector.broadcast %cst_3 : f32 to vector<1x256xf32>
    %11 = arith.divf %9, %10 : vector<1x256xf32>
    %12 = math.sqrt %11 : vector<1x256xf32>
    %c0_4 = arith.constant 0 : index
    %c0_5 = arith.constant 0 : index
    %13 = vector.load %arg2[%c0_4, %c0_5] : memref<1x256xf32, #tpu.memory_space<vmem>>, vector<1x256xf32>
    tpu.vector_store %arg2[%c0_4, %c0_5], %12 {strides = array<i32>} : memref<1x256xf32, #tpu.memory_space<vmem>>, vector<1x256xf32>,
    return
  }
  func.func @transform_0(%arg0: i32) -> (i32, i32) {
    %c0_i32 = arith.constant 0 : i32
    %c0_i32_0 = arith.constant 0 : i32
    return %c0_i32, %arg0 : i32, i32
  }
  func.func @transform_1(%arg0: i32) -> (i32, i32) {
    %c0_i32 = arith.constant 0 : i32
    %c0_i32_0 = arith.constant 0 : i32
    return %c0_i32, %arg0 : i32, i32
  }
}

</mosaic_0001>

<llo_original>
// kernel: tpu_custom_call.1
$region0: #{tpu_custom_call.1}
  #allocation0 [shape = 'u32[]', space=smem, size = 0x4, offset = 0x4, fixed_abs, tag = 'smem constant byte address 0x4 - core index']
  #allocation1 [shape = 'u32[144,128]{1,0:T(1,128)}', space=vmem, size = 0x12000, scoped, tag = 'internal scratch']
  %s0 = inlined_call_operand.hbm [shape: f32[16,256], index: 0, kind: input, shape index: {}]
  %s1 = inlined_call_operand.hbm [shape: f32[1,256], index: 1, kind: output, shape index: {}]
  %s2 = sld [smem:[#allocation0]]
  $region18: #{tpu_custom_call.1} parent=0
    _
  %s4 = ssub.s32 1, %s2
  %s5 = scalar_select 0, %s4, %s2
  $region1: #{tpu_custom_call.1} parent=0
    #allocation2 [shape = 'u8[16384]{0}', space=vmem, size = 0x4000, scoped, tag = 'input window, operand 0, single buffered']
    #allocation3 [shape = 's32[1]{0}', space=sflag, size = 0x4, scoped, tag = 'scoped memory for tpu_custom_call.1']
    #allocation4 [shape = 's32[1]{0}', space=sflag, size = 0x4, scoped, tag = 'scoped memory for tpu_custom_call.1']
    #allocation5 [shape = 'u8[1024]{0}', space=vmem, size = 0x400, scoped, tag = 'output window, operand 0, single buffered']
    %6 = vsyncpa [#allocation3], 0
    %7 = vsyncpa [#allocation4], 0
    // Predicated region
    $region2: #{tpu_custom_call.1} parent=1 // pred_check
      _
    $region3: #{tpu_custom_call.1} parent=1 // pred_check_branch
      %9 = sbr.rel (0) target = $region5
    $region4: #{tpu_custom_call.1} parent=1 // pred_region
      %s11 = ssub.s32 512, 512
      %12 = vsyncadd [#allocation3], %s11
      %s13 = sshll.u32 [#allocation2], 4
      %s14 = int_to_ptr.vmem [resolvable:$true] %s13
      %19 = dma.hbm_to_vmem [thread:$0]  %s0, 512, %s14, [#allocation3], 256, 256, 16
    $region5: #{tpu_custom_call.1} parent=1 // pred_fallthru
      _
    // Predicated region
    $region6: #{tpu_custom_call.1} parent=1 // pred_check
      _
    $region7: #{tpu_custom_call.1} parent=1 // pred_check_branch
      %21 = sbr.rel (0) target = $region9
    $region8: #{tpu_custom_call.1} parent=1 // pred_region
      %22 = dma.done [#allocation3], 512
    $region9: #{tpu_custom_call.1} parent=1 // pred_fallthru
      _
    %v23 = vld [vmem:[#allocation2] sm:$0xff]
    %v24 = vld [vmem:[#allocation2 + $0x8] sm:$0xff]
    %v25 = vld [vmem:[#allocation2 + $0x10] sm:$0xff]
    %v26 = vld [vmem:[#allocation2 + $0x18] sm:$0xff]
    %v27 = vadd.f32 %v23, %v25
    %v28 = vrot.slane %v27, 4
    %v29 = vadd.f32 %v27, %v28
    %v30 = vrot.slane %v29, 2
    %v31 = vadd.f32 %v29, %v30
    %v32 = vrot.slane %v31, 1
    %v33 = vadd.f32 %v31, %v32
    %v34 = vadd.f32 %v24, %v26
    %v35 = vrot.slane %v34, 4
    %v36 = vadd.f32 %v34, %v35
    %v37 = vrot.slane %v36, 2
    %v38 = vadd.f32 %v36, %v37
    %v39 = vrot.slane %v38, 1
    %v40 = vadd.f32 %v38, %v39
    %v41 = vrcp.pop 16.0
    %v42 = vmul.f32 %v33, %v41
    %v43 = vmul.f32 %v40, %v41
    %v44 = vsub.f32 %v23, %v42
    %v45 = vsub.f32 %v24, %v43
    %v46 = vsub.f32 %v25, %v42
    %v47 = vsub.f32 %v26, %v43
    %v48 = vmul.f32 %v44, %v44
    %v49 = vmul.f32 %v45, %v45
    %v50 = vmul.f32 %v46, %v46
    %v51 = vmul.f32 %v47, %v47
    %v52 = vadd.f32 %v48, %v50
    %v53 = vrot.slane %v52, 4
    %v54 = vadd.f32 %v52, %v53
    %v55 = vrot.slane %v54, 2
    %v56 = vadd.f32 %v54, %v55
    %v57 = vrot.slane %v56, 1
    %v58 = vadd.f32 %v56, %v57
    %v59 = vadd.f32 %v49, %v51
    %v60 = vrot.slane %v59, 4
    %v61 = vadd.f32 %v59, %v60
    %v62 = vrot.slane %v61, 2
    %v63 = vadd.f32 %v61, %v62
    %v64 = vrot.slane %v63, 1
    %v65 = vadd.f32 %v63, %v64
    %v66 = vrcp.pop 15.0
    %v67 = vmul.f32 %v58, %v66
    %v68 = vmul.f32 %v65, %v66
    %v69 = vrsqrt.pop %v67
    %v70 = vmul.f32 %v67, %v69
    %vm71 = vcmp.eq.f32.partialorder %v67, inf
    %v72 = vsel %vm71, %v67, %v70
    %vm73 = vcmp.eq.f32.partialorder %v67, 0.0
    %v74 = vand.u32 %v67, 2147483648
    %v75 = vsel %vm73, %v74, %v72
    %v76 = vrsqrt.pop %v68
    %v77 = vmul.f32 %v68, %v76
    %vm78 = vcmp.eq.f32.partialorder %v68, inf
    %v79 = vsel %vm78, %v68, %v77
    %vm80 = vcmp.eq.f32.partialorder %v68, 0.0
    %v81 = vand.u32 %v68, 2147483648
    %v82 = vsel %vm80, %v81, %v79
    %v85 = vcombine.low %v75, %v82
    %v87 = vunpack.c.l.s4 1966171168
    %v88 = vunpack.c.0.s8 %v87
    %v89 = vlaneseq
    %v90 = vshrl.u32 %v89, 7
    %v91 = vsub.s32 %v88, %v90
    %v92 = vrot.slane %v85, %v91
    %v94 = vunpack.c.l.s4 1966171168
    %v95 = vunpack.c.0.s8 %v94
    %v96 = vlaneseq
    %v97 = vshrl.u32 %v96, 7
    %v98 = vsub.s32 %v95, %v97
    %v99 = vrot.slane %v92, %v98
    %v101 = vlaneseq
    %vm102 = vcmp.ge.s32.totalorder %v101, 0
    %vm103 = vcmp.lt.s32.totalorder %v101, 256
    %vm104 = vmand %vm102, %vm103
    %105 = vst.msk [vmem:[#allocation5] sm:$0x3] %vm104, %v99
    // Predicated region
    $region10: #{tpu_custom_call.1} parent=1 // pred_check
      _
    $region11: #{tpu_custom_call.1} parent=1 // pred_check_branch
      %107 = sbr.rel (0) target = $region13
    $region12: #{tpu_custom_call.1} parent=1 // pred_region
      %s109 = ssub.s32 32, 32
      %110 = vsyncadd [#allocation4], %s109
      %s112 = sshll.u32 [#allocation5], 4
      %s113 = int_to_ptr.vmem [resolvable:$true] %s112
      %115 = dma.vmem_to_hbm [thread:$0]  %s113, 32, %s1, [#allocation4]
    $region13: #{tpu_custom_call.1} parent=1 // pred_fallthru
      _
    // Predicated region
    $region14: #{tpu_custom_call.1} parent=1 // pred_check
      _
    $region15: #{tpu_custom_call.1} parent=1 // pred_check_branch
      %117 = sbr.rel (0) target = $region17
    $region16: #{tpu_custom_call.1} parent=1 // pred_region
      %118 = dma.done [#allocation4], 32
    $region17: #{tpu_custom_call.1} parent=1 // pred_fallthru
      _
    %119 = vsyncpa [#allocation3], 1
    %120 = vsyncpa [#allocation4], 1

</llo_original>
